<compile_context>
chip_gen: v7x
topology: tpu7x:2x2x1
jax: 0.10.0
libtpu: 0.0.40
codegen_flags: <defaults>
</compile_context>

<pallas_src>
import functools
import math

import jax
import jax.numpy as jnp
import numpy as np
from jax.experimental import pallas as pl
from jax.experimental.pallas import tpu as pltpu

_VMEM_LIMIT = 32 * 1024 * 1024   # fits v5e/v6e/v7x (v7x physical = 64 MiB)


def _round_up(v, m):
    return ((v + m - 1) // m) * m


# ---------------------------------------------------------------------------
# Kernel 1: sum the 256-wide K-chunks of a (rows, K) array -> (rows, 256).
# Grid = (row_blocks, k_blocks); K axis last ("arbitrary"), output resident.
# Each step loads `chunks` contiguous 256-chunks (wide DMA) and reduces them
# with static in-kernel slices.
# ---------------------------------------------------------------------------
def _chunk_reduce_kernel(x_ref, o_ref, *, chunks):
    @pl.when(pl.program_id(1) == 0)
    def _():
        o_ref[...] = jnp.zeros_like(o_ref)

    acc = x_ref[:, 0:256]
    for c in range(1, chunks):
        acc = acc + x_ref[:, c * 256:(c + 1) * 256]
    o_ref[...] += acc


def _chunk_reduce(arr, num_chunks):
    rows = arr.shape[0]
    # Row tile: full extent when small, else 512 (multiple of 8; last block may
    # be partial -- OOB rows never reach the valid output rows).
    tile_rows = rows if rows <= 512 else 512
    row_blocks = pl.cdiv(rows, tile_rows)

    # Chunks per grid step: largest divisor of num_chunks that is <= 8, so the
    # K grid covers exactly the first num_chunks*256 columns (trailing K tail
    # is never touched) without any masking.
    cpb = 1
    for c in range(min(num_chunks, 8), 0, -1):
        if num_chunks % c == 0:
            cpb = c
            break
    k_blocks = num_chunks // cpb

    kernel = functools.partial(_chunk_reduce_kernel, chunks=cpb)
    return pl.pallas_call(
        kernel,
        out_shape=jax.ShapeDtypeStruct((rows, 256), jnp.float32),
        grid=(row_blocks, k_blocks),
        in_specs=[pl.BlockSpec((tile_rows, 256 * cpb), lambda r, k: (r, k))],
        out_specs=pl.BlockSpec((tile_rows, 256), lambda r, k: (r, 0)),
        compiler_params=pltpu.CompilerParams(
            dimension_semantics=("parallel", "arbitrary"),
            vmem_limit_bytes=_VMEM_LIMIT),
    )(arr)


# ---------------------------------------------------------------------------
# Kernel 2: (tm,256) @ (256,tn) MXU matmul + bias (bias added to ALL columns).
# The reduced weight arrives pre-transposed and pre-masked, so the kernel body
# is a single dot + add: no per-step transpose, no per-step masking.
# ---------------------------------------------------------------------------
def _matmul_bias_kernel(xs_ref, wt_ref, b_ref, o_ref):
    o_ref[...] = (
        jnp.dot(xs_ref[...], wt_ref[...], preferred_element_type=jnp.float32)
        + b_ref[...]
    )


# ---------------------------------------------------------------------------
# Wrapper
# ---------------------------------------------------------------------------
@jax.jit
def linear_cim_pallas(x, weight, bias):
    """x: (H, K) f32, weight: (N, K) f32 (PyTorch layout), bias: (N,) f32."""
    x = x.astype(jnp.float32)
    weight = weight.astype(jnp.float32)
    bias = bias.astype(jnp.float32)

    H, K = x.shape
    N, Kw = weight.shape
    assert Kw == K

    num_chunks = K // 256                 # == num_vec == num_h in the reference
    num_w_cols = (N // 64) * 64           # output columns the reference writes

    # --- Phase 1: 256-chunk reductions on the UNPADDED arrays (one HBM pass) ---
    if num_chunks == 0:
        x_sum = jnp.zeros((H, 256), jnp.float32)
        w_red = jnp.zeros((N, 256), jnp.float32)
    elif num_chunks == 1:
        x_sum = x[:, :256]
        w_red = weight[:, :256]
    else:
        x_sum = _chunk_reduce(x, num_chunks)        # (H, 256)
        w_red = _chunk_reduce(weight, num_chunks)   # (N, 256)

    # --- Phase 2: one-shot fixups on the small reduced weight ---
    if num_w_cols < N:
        # Output columns >= num_w*64 must be zero BEFORE the bias add.
        w_red = w_red.at[num_w_cols:, :].set(0.0)
    w_red_t = w_red.T                               # (256, N), done once

    # --- Phase 3: tile / pad only the small reduced operands ---
    tm = min(512, _round_up(H, 8))
    Hp = _round_up(H, tm)
    Np = _round_up(N, 128)
    m = Np // 128
    max_d = min(m, 8)                               # tn <= 1024, lane-dense
    if Hp // tm == 1 and m >= 2:
        # Keep >= 2 grid points along N when H gives a single row block
        # (v7x has 2 TensorCores sharded over the parallel grid axes).
        max_d = max(1, min(max_d, m // 2))
    d = 1
    for dd in range(max_d, 0, -1):
        if m % dd == 0:
            d = dd
            break
    tn = 128 * d

    x_sum_p = x_sum if Hp == H else jnp.pad(x_sum, ((0, Hp - H), (0, 0)))
    wt_p = w_red_t if Np == N else jnp.pad(w_red_t, ((0, 0), (0, Np - N)))
    b_p = (bias if Np == N else jnp.pad(bias, (0, Np - N))).reshape(1, Np)

    # Grid order (N-blocks outer, H-blocks inner): each (256, tn) weight tile
    # stays resident across the inner axis and is read from HBM exactly once.
    out = pl.pallas_call(
        _matmul_bias_kernel,
        out_shape=jax.ShapeDtypeStruct((Hp, Np), jnp.float32),
        grid=(Np // tn, Hp // tm),
        in_specs=[
            pl.BlockSpec((tm, 256), lambda j, i: (i, 0)),
            pl.BlockSpec((256, tn), lambda j, i: (0, j)),
            pl.BlockSpec((1, tn), lambda j, i: (0, j)),
        ],
        out_specs=pl.BlockSpec((tm, tn), lambda j, i: (i, j)),
        compiler_params=pltpu.CompilerParams(
            dimension_semantics=("parallel", "parallel"),
            vmem_limit_bytes=_VMEM_LIMIT),
    )(x_sum_p, wt_p, b_p)

    if Hp != H or Np != N:
        out = out[:H, :N]
    return out


def linear_cim_reference_np(x, weight, bias):
    """Host numpy reference mirroring the PyTorch Linear_CIM loops."""
    x = np.asarray(x, np.float64)
    weight = np.asarray(weight, np.float64)
    bias = np.asarray(bias, np.float64)
    H, K = x.shape
    N = weight.shape[0]
    wt = weight.T
    num_chunks = K // 256
    num_w_cols = (N // 64) * 64
    out = np.zeros((H, N), np.float64)
    if num_chunks > 0:
        x_sum = sum(x[:, w * 256:(w + 1) * 256] for w in range(num_chunks))
        w_sum = sum(wt[i * 256:(i + 1) * 256, :] for i in range(num_chunks))
        core = x_sum @ w_sum
        out[:, :num_w_cols] = core[:, :num_w_cols]
    return out + bias[None, :]


if __name__ == "__main__":
    # Small shapes consistent with the module's 256/64 tiling.
    cases = [
        (8, 512, 128),    # aligned: 2 K-chunks, lane-aligned N
        (10, 4096, 160),  # padding paths: H%8!=0, 16 K-chunks (8 per step, 2 k
                          # steps), N%64!=0 tail columns, N%128!=0 lane padding
    ]

    key = jax.random.PRNGKey(0)
    ok = True
    for (H, in_features, out_features) in cases:
        key, kx, kw, kb = jax.random.split(key, 4)

        # Deterministic init mimicking the PyTorch module's reset_parameters:
        # kaiming_uniform_(weight, a=sqrt(5)) -> U(-b, b), b = sqrt(6/(6*fan_in))
        fan_in = in_features
        bound_w = math.sqrt(6.0 / (6.0 * fan_in))
        weight = jax.random.uniform(
            kw, (out_features, in_features), jnp.float32, -bound_w, bound_w)
        bound_b = 1.0 / math.sqrt(fan_in)
        bias = jax.random.uniform(kb, (out_features,), jnp.float32,
                                  -bound_b, bound_b)
        x = jax.random.normal(kx, (H, in_features), jnp.float32)

        out = jax.block_until_ready(linear_cim_pallas(x, weight, bias))
        ref = linear_cim_reference_np(x, weight, bias)

        assert out.shape == (H, out_features)
        assert np.allclose(np.asarray(out, np.float64), ref,
                           rtol=2e-3, atol=2e-3), \
            f"mismatch vs reference for case {(H, in_features, out_features)}"

    print("KERNEL_OK")
</pallas_src>

<mosaic_0001>
module attributes {stable_mosaic.version = 11 : i64} {
  func.func @_chunk_reduce_kernel(%arg0: i32, %arg1: i32, %arg2: memref<128x512xf32, #tpu.memory_space<vmem>>, %arg3: memref<128x256xf32, #tpu.memory_space<vmem>>) attributes {dimension_semantics = [#tpu.dimension_semantics<parallel>, #tpu.dimension_semantics<arbitrary>], iteration_bounds = array<i64: 1, 1>, scalar_prefetch = 0 : i64, scratch_operands = 0 : i64, tpu.core_type = #tpu.core_type<tc>, window_params = [{transform_indices = @transform_0, window_bounds = array<i64: 128, 512>}, {transform_indices = @transform_1, window_bounds = array<i64: 128, 256>}]} {
    %c0_i32 = arith.constant 0 : i32
    %0 = arith.cmpi eq, %arg1, %c0_i32 : i32
    %1 = arith.extui %0 : i1 to i32
    %c0_i32_0 = arith.constant 0 : i32
    %2 = arith.cmpi ne, %1, %c0_i32_0 : i32
    scf.if %2 {
      %cst = arith.constant 0.000000e+00 : f32
      %9 = vector.broadcast %cst : f32 to vector<128x256xf32>
      %c0_7 = arith.constant 0 : index
      %c0_8 = arith.constant 0 : index
      %10 = vector.load %arg3[%c0_7, %c0_8] : memref<128x256xf32, #tpu.memory_space<vmem>>, vector<128x256xf32>
      tpu.vector_store %arg3[%c0_7, %c0_8], %9 {strides = array<i32>} : memref<128x256xf32, #tpu.memory_space<vmem>>, vector<128x256xf32>,
    } else {
    }
    %c0 = arith.constant 0 : index
    %c0_1 = arith.constant 0 : index
    %3 = vector.load %arg2[%c0, %c0_1] : memref<128x512xf32, #tpu.memory_space<vmem>>, vector<128x256xf32>
    %c0_2 = arith.constant 0 : index
    %c256 = arith.constant 256 : index
    %4 = vector.load %arg2[%c0_2, %c256] : memref<128x512xf32, #tpu.memory_space<vmem>>, vector<128x256xf32>
    %5 = arith.addf %3, %4 : vector<128x256xf32>
    %c0_3 = arith.constant 0 : index
    %c0_4 = arith.constant 0 : index
    %6 = vector.load %arg3[%c0_3, %c0_4] : memref<128x256xf32, #tpu.memory_space<vmem>>, vector<128x256xf32>
    %7 = arith.addf %6, %5 : vector<128x256xf32>
    %c0_5 = arith.constant 0 : index
    %c0_6 = arith.constant 0 : index
    %8 = vector.load %arg3[%c0_5, %c0_6] : memref<128x256xf32, #tpu.memory_space<vmem>>, vector<128x256xf32>
    tpu.vector_store %arg3[%c0_5, %c0_6], %7 {strides = array<i32>} : memref<128x256xf32, #tpu.memory_space<vmem>>, vector<128x256xf32>,
    return
  }
  func.func @transform_0(%arg0: i32, %arg1: i32) -> (i32, i32) {
    %c0_i32 = arith.constant 0 : i32
    return %arg0, %arg1 : i32, i32
  }
  func.func @transform_1(%arg0: i32, %arg1: i32) -> (i32, i32) {
    %c0_i32 = arith.constant 0 : i32
    %c0_i32_0 = arith.constant 0 : i32
    return %arg0, %c0_i32 : i32, i32
  }
}

module attributes {stable_mosaic.version = 11 : i64} {
  func.func @_matmul_bias_kernel(%arg0: i32, %arg1: i32, %arg2: memref<8x256xf32, #tpu.memory_space<vmem>>, %arg3: memref<256x128xf32, #tpu.memory_space<vmem>>, %arg4: memref<1x128xf32, #tpu.memory_space<vmem>>, %arg5: memref<8x128xf32, #tpu.memory_space<vmem>>) attributes {dimension_semantics = [#tpu.dimension_semantics<parallel>, #tpu.dimension_semantics<parallel>], iteration_bounds = array<i64: 1, 1>, scalar_prefetch = 0 : i64, scratch_operands = 0 : i64, tpu.core_type = #tpu.core_type<tc>, window_params = [{transform_indices = @transform_0, window_bounds = array<i64: 8, 256>}, {transform_indices = @transform_1, window_bounds = array<i64: 256, 128>}, {transform_indices = @transform_2, window_bounds = array<i64: 1, 128>}, {transform_indices = @transform_3, window_bounds = array<i64: 8, 128>}]} {
    %c0 = arith.constant 0 : index
    %c0_0 = arith.constant 0 : index
    %0 = vector.load %arg2[%c0, %c0_0] : memref<8x256xf32, #tpu.memory_space<vmem>>, vector<8x256xf32>
    %c0_1 = arith.constant 0 : index
    %c0_2 = arith.constant 0 : index
    %1 = vector.load %arg3[%c0_1, %c0_2] : memref<256x128xf32, #tpu.memory_space<vmem>>, vector<256x128xf32>
    %cst = arith.constant dense<0.000000e+00> : vector<8x128xf32>
    %2 = tpu.matmul %0, %1, %cst {dimension_numbers = #tpu.dot_dimension_numbers<[1], [0], [0], [1], [0, 0, 1, 1], [], []>} : vector<8x256xf32>, vector<256x128xf32>, vector<8x128xf32> -> vector<8x128xf32>
    %c0_3 = arith.constant 0 : index
    %c0_4 = arith.constant 0 : index
    %3 = vector.load %arg4[%c0_3, %c0_4] : memref<1x128xf32, #tpu.memory_space<vmem>>, vector<1x128xf32>
    %4 = vector.broadcast %3 : vector<1x128xf32> to vector<8x128xf32>
    %5 = arith.addf %2, %4 : vector<8x128xf32>
    %c0_5 = arith.constant 0 : index
    %c0_6 = arith.constant 0 : index
    %6 = vector.load %arg5[%c0_5, %c0_6] : memref<8x128xf32, #tpu.memory_space<vmem>>, vector<8x128xf32>
    tpu.vector_store %arg5[%c0_5, %c0_6], %5 {strides = array<i32>} : memref<8x128xf32, #tpu.memory_space<vmem>>, vector<8x128xf32>,
    return
  }
  func.func @transform_0(%arg0: i32, %arg1: i32) -> (i32, i32) {
    %c0_i32 = arith.constant 0 : i32
    %c0_i32_0 = arith.constant 0 : i32
    return %arg1, %c0_i32 : i32, i32
  }
  func.func @transform_1(%arg0: i32, %arg1: i32) -> (i32, i32) {
    %c0_i32 = arith.constant 0 : i32
    %c0_i32_0 = arith.constant 0 : i32
    return %c0_i32, %arg0 : i32, i32
  }
  func.func @transform_2(%arg0: i32, %arg1: i32) -> (i32, i32) {
    %c0_i32 = arith.constant 0 : i32
    %c0_i32_0 = arith.constant 0 : i32
    return %c0_i32, %arg0 : i32, i32
  }
  func.func @transform_3(%arg0: i32, %arg1: i32) -> (i32, i32) {
    %c0_i32 = arith.constant 0 : i32
    return %arg1, %arg0 : i32, i32
  }
}

module attributes {stable_mosaic.version = 11 : i64} {
  func.func @_chunk_reduce_kernel(%arg0: i32, %arg1: i32, %arg2: memref<8x512xf32, #tpu.memory_space<vmem>>, %arg3: memref<8x256xf32, #tpu.memory_space<vmem>>) attributes {dimension_semantics = [#tpu.dimension_semantics<parallel>, #tpu.dimension_semantics<arbitrary>], iteration_bounds = array<i64: 1, 1>, scalar_prefetch = 0 : i64, scratch_operands = 0 : i64, tpu.core_type = #tpu.core_type<tc>, window_params = [{transform_indices = @transform_0, window_bounds = array<i64: 8, 512>}, {transform_indices = @transform_1, window_bounds = array<i64: 8, 256>}]} {
    %c0_i32 = arith.constant 0 : i32
    %0 = arith.cmpi eq, %arg1, %c0_i32 : i32
    %1 = arith.extui %0 : i1 to i32
    %c0_i32_0 = arith.constant 0 : i32
    %2 = arith.cmpi ne, %1, %c0_i32_0 : i32
    scf.if %2 {
      %cst = arith.constant 0.000000e+00 : f32
      %9 = vector.broadcast %cst : f32 to vector<8x256xf32>
      %c0_7 = arith.constant 0 : index
      %c0_8 = arith.constant 0 : index
      %10 = vector.load %arg3[%c0_7, %c0_8] : memref<8x256xf32, #tpu.memory_space<vmem>>, vector<8x256xf32>
      tpu.vector_store %arg3[%c0_7, %c0_8], %9 {strides = array<i32>} : memref<8x256xf32, #tpu.memory_space<vmem>>, vector<8x256xf32>,
    } else {
    }
    %c0 = arith.constant 0 : index
    %c0_1 = arith.constant 0 : index
    %3 = vector.load %arg2[%c0, %c0_1] : memref<8x512xf32, #tpu.memory_space<vmem>>, vector<8x256xf32>
    %c0_2 = arith.constant 0 : index
    %c256 = arith.constant 256 : index
    %4 = vector.load %arg2[%c0_2, %c256] : memref<8x512xf32, #tpu.memory_space<vmem>>, vector<8x256xf32>
    %5 = arith.addf %3, %4 : vector<8x256xf32>
    %c0_3 = arith.constant 0 : index
    %c0_4 = arith.constant 0 : index
    %6 = vector.load %arg3[%c0_3, %c0_4] : memref<8x256xf32, #tpu.memory_space<vmem>>, vector<8x256xf32>
    %7 = arith.addf %6, %5 : vector<8x256xf32>
    %c0_5 = arith.constant 0 : index
    %c0_6 = arith.constant 0 : index
    %8 = vector.load %arg3[%c0_5, %c0_6] : memref<8x256xf32, #tpu.memory_space<vmem>>, vector<8x256xf32>
    tpu.vector_store %arg3[%c0_5, %c0_6], %7 {strides = array<i32>} : memref<8x256xf32, #tpu.memory_space<vmem>>, vector<8x256xf32>,
    return
  }
  func.func @transform_0(%arg0: i32, %arg1: i32) -> (i32, i32) {
    %c0_i32 = arith.constant 0 : i32
    return %arg0, %arg1 : i32, i32
  }
  func.func @transform_1(%arg0: i32, %arg1: i32) -> (i32, i32) {
    %c0_i32 = arith.constant 0 : i32
    %c0_i32_0 = arith.constant 0 : i32
    return %arg0, %c0_i32 : i32, i32
  }
}

</mosaic_0001>

<llo_original>
// kernel: linear_cim_pallas.3
$region0: #{linear_cim_pallas.3}
  #allocation0 [shape = 'u32[]', space=smem, size = 0x4, offset = 0x4, fixed_abs, tag = 'smem constant byte address 0x4 - core index']
  #allocation1 [shape = 'u32[144,128]{1,0:T(1,128)}', space=vmem, size = 0x12000, scoped, tag = 'internal scratch']
  %s0 = inlined_call_operand.vmem [shape: f32[8,512], index: 0, kind: input, shape index: {}]
  %s1 = inlined_call_operand.vmem [shape: f32[8,256], index: 1, kind: output, shape index: {}]
  %s2 = sld [smem:[#allocation0]]
  $region18: #{linear_cim_pallas.3} parent=0
    _
  %s4 = ssub.s32 1, %s2
  %s5 = scalar_select 0, %s4, %s2
  // Predicated region
  $region2: #{linear_cim_pallas.3} parent=0 // pred_check
    _
  $region3: #{linear_cim_pallas.3} parent=0 // pred_check_branch
    %7 = sbr.rel (0) target = $region5
  $region4: #{linear_cim_pallas.3} parent=0 // pred_region
    _
  $region5: #{linear_cim_pallas.3} parent=0 // pred_fallthru
    _
  %p8 = scmp.eq.s32.totalorder 0, 0
  // Predicated region
  $region6: #{linear_cim_pallas.3} parent=0 // pred_check
    %p9 = pneg %p8
  $region7: #{linear_cim_pallas.3} parent=0 // pred_check_branch
    %11 = sbr.rel (%p9) target = $region9
  $region8: #{linear_cim_pallas.3} parent=0 // pred_region
    %12 = vst [vmem:[%s1] sm:$0xff] 0.0
    %13 = vst [vmem:[%s1 + $0x8] sm:$0xff] 0.0
  $region9: #{linear_cim_pallas.3} parent=0 // pred_fallthru
    _
  %v14 = vld [vmem:[%s0] sm:$0xff]
  %v15 = vld [vmem:[%s0 + $0x8] sm:$0xff]
  %v16 = vld [vmem:[%s0 + $0x10] sm:$0xff]
  %v17 = vld [vmem:[%s0 + $0x18] sm:$0xff]
  %v18 = vadd.f32 %v14, %v16
  %v19 = vadd.f32 %v15, %v17
  %v20 = vld [vmem:[%s1] sm:$0xff]
  %v21 = vld [vmem:[%s1 + $0x8] sm:$0xff]
  %v22 = vadd.f32 %v20, %v18
  %v23 = vadd.f32 %v21, %v19
  %24 = vst [vmem:[%s1] sm:$0xff] %v22
  %25 = vst [vmem:[%s1 + $0x8] sm:$0xff] %v23
  // Predicated region
  $region10: #{linear_cim_pallas.3} parent=0 // pred_check
    _
  $region11: #{linear_cim_pallas.3} parent=0 // pred_check_branch
    %27 = sbr.rel (0) target = $region13
  $region12: #{linear_cim_pallas.3} parent=0 // pred_region
    _
  $region13: #{linear_cim_pallas.3} parent=0 // pred_fallthru
    _
  // Predicated region
  $region14: #{linear_cim_pallas.3} parent=0 // pred_check
    _
  $region15: #{linear_cim_pallas.3} parent=0 // pred_check_branch
    %29 = sbr.rel (0) target = $region17
  $region16: #{linear_cim_pallas.3} parent=0 // pred_region
    _
  $region17: #{linear_cim_pallas.3} parent=0 // pred_fallthru
    _

// kernel: linear_cim_pallas.5
$region0: #{linear_cim_pallas.5}
  #allocation0 [shape = 'u32[]', space=smem, size = 0x4, offset = 0x4, fixed_abs, tag = 'smem constant byte address 0x4 - core index']
  #allocation1 [shape = 'u32[144,128]{1,0:T(1,128)}', space=vmem, size = 0x12000, scoped, tag = 'internal scratch']
  %s0 = inlined_call_operand.vmem [shape: f32[8,256], index: 0, kind: input, shape index: {}]
  %s1 = inlined_call_operand.vmem [shape: f32[256,128], index: 1, kind: input, shape index: {}]
  %s2 = inlined_call_operand.vmem [shape: f32[1,128], index: 2, kind: input, shape index: {}]
  %s3 = inlined_call_operand.hbm [shape: f32[8,128], index: 3, kind: output, shape index: {}]
  %s4 = sld [smem:[#allocation0]]
  $region22: #{linear_cim_pallas.5} parent=0
    _
  %s6 = ssub.s32 1, %s4
  %s7 = scalar_select 0, %s6, %s4
  $region1: #{linear_cim_pallas.5} parent=0
    #allocation2 [shape = 'u8[4096]{0}', space=vmem, size = 0x1000, scoped, tag = 'output window, operand 0, single buffered']
    #allocation3 [shape = 's32[1]{0}', space=sflag, size = 0x4, scoped, tag = 'scoped memory for linear_cim_pallas.5']
    %8 = vsyncpa [#allocation3], 0
    // Predicated region
    $region2: #{linear_cim_pallas.5} parent=1 // pred_check
      _
    $region3: #{linear_cim_pallas.5} parent=1 // pred_check_branch
      %10 = sbr.rel (0) target = $region5
    $region4: #{linear_cim_pallas.5} parent=1 // pred_region
      _
    $region5: #{linear_cim_pallas.5} parent=1 // pred_fallthru
      _
    // Predicated region
    $region6: #{linear_cim_pallas.5} parent=1 // pred_check
      _
    $region7: #{linear_cim_pallas.5} parent=1 // pred_check_branch
      %12 = sbr.rel (0) target = $region9
    $region8: #{linear_cim_pallas.5} parent=1 // pred_region
      _
    $region9: #{linear_cim_pallas.5} parent=1 // pred_fallthru
      _
    // Predicated region
    $region10: #{linear_cim_pallas.5} parent=1 // pred_check
      _
    $region11: #{linear_cim_pallas.5} parent=1 // pred_check_branch
      %14 = sbr.rel (0) target = $region13
    $region12: #{linear_cim_pallas.5} parent=1 // pred_region
      _
    $region13: #{linear_cim_pallas.5} parent=1 // pred_fallthru
      _
    %v15 = vld [vmem:[%s0] sm:$0xff]
    %v16 = vld [vmem:[%s0 + $0x8] sm:$0xff]
    %v17 = vld [vmem:[%s1] sm:$0xff]
    %v18 = vld [vmem:[%s1 + $0x8] sm:$0xff]
    %v19 = vld [vmem:[%s1 + $0x10] sm:$0xff]
    %v20 = vld [vmem:[%s1 + $0x18] sm:$0xff]
    %v21 = vld [vmem:[%s1 + $0x20] sm:$0xff]
    %v22 = vld [vmem:[%s1 + $0x28] sm:$0xff]
    %v23 = vld [vmem:[%s1 + $0x30] sm:$0xff]
    %v24 = vld [vmem:[%s1 + $0x38] sm:$0xff]
    %v25 = vld [vmem:[%s1 + $0x40] sm:$0xff]
    %v26 = vld [vmem:[%s1 + $0x48] sm:$0xff]
    %v27 = vld [vmem:[%s1 + $0x50] sm:$0xff]
    %v28 = vld [vmem:[%s1 + $0x58] sm:$0xff]
    %v29 = vld [vmem:[%s1 + $0x60] sm:$0xff]
    %v30 = vld [vmem:[%s1 + $0x68] sm:$0xff]
    %v31 = vld [vmem:[%s1 + $0x70] sm:$0xff]
    %v32 = vld [vmem:[%s1 + $0x78] sm:$0xff]
    %v33 = vld [vmem:[%s1 + $0x80] sm:$0xff]
    %v34 = vld [vmem:[%s1 + $0x88] sm:$0xff]
    %v35 = vld [vmem:[%s1 + $0x90] sm:$0xff]
    %v36 = vld [vmem:[%s1 + $0x98] sm:$0xff]
    %v37 = vld [vmem:[%s1 + $0xa0] sm:$0xff]
    %v38 = vld [vmem:[%s1 + $0xa8] sm:$0xff]
    %v39 = vld [vmem:[%s1 + $0xb0] sm:$0xff]
    %v40 = vld [vmem:[%s1 + $0xb8] sm:$0xff]
    %v41 = vld [vmem:[%s1 + $0xc0] sm:$0xff]
    %v42 = vld [vmem:[%s1 + $0xc8] sm:$0xff]
    %v43 = vld [vmem:[%s1 + $0xd0] sm:$0xff]
    %v44 = vld [vmem:[%s1 + $0xd8] sm:$0xff]
    %v45 = vld [vmem:[%s1 + $0xe0] sm:$0xff]
    %v46 = vld [vmem:[%s1 + $0xe8] sm:$0xff]
    %v47 = vld [vmem:[%s1 + $0xf0] sm:$0xff]
    %v48 = vld [vmem:[%s1 + $0xf8] sm:$0xff]
    %v49 = vld [vmem:[%s2] sm:$0x1]
    %v51 = vlaneseq
    %v52 = vshrl.u32 %v51, 7
    %v53 = vsub.s32 0, %v52
    %v54 = vrot.slane %v49, %v53
    %56 = vmatprep.subr.mxu0 0.0
    %57 = vmatpush1.msra.mxu0 %v17
    %58 = vmatprep.subr.mxu0 0.0
    %59 = vmatpush1.msra.mxu0 %v18
    %60 = vmatprep.subr.mxu0 0.0
    %61 = vmatpush1.msra.mxu0 %v19
    %62 = vmatprep.subr.mxu0 0.0
    %63 = vmatpush1.msra.mxu0 %v20
    %64 = vmatprep.subr.mxu0 0.0
    %65 = vmatpush1.msra.mxu0 %v21
    %66 = vmatprep.subr.mxu0 0.0
    %67 = vmatpush1.msra.mxu0 %v22
    %68 = vmatprep.subr.mxu0 0.0
    %69 = vmatpush1.msra.mxu0 %v23
    %70 = vmatprep.subr.mxu0 0.0
    %71 = vmatpush1.msra.mxu0 %v24
    %72 = vmatprep.subr.mxu0 0.0
    %73 = vmatpush1.msra.mxu0 %v25
    %74 = vmatprep.subr.mxu0 0.0
    %75 = vmatpush1.msra.mxu0 %v26
    %76 = vmatprep.subr.mxu0 0.0
    %77 = vmatpush1.msra.mxu0 %v27
    %78 = vmatprep.subr.mxu0 0.0
    %79 = vmatpush1.msra.mxu0 %v28
    %80 = vmatprep.subr.mxu0 0.0
    %81 = vmatpush1.msra.mxu0 %v29
    %82 = vmatprep.subr.mxu0 0.0
    %83 = vmatpush1.msra.mxu0 %v30
    %84 = vmatprep.subr.mxu0 0.0
    %85 = vmatpush1.msra.mxu0 %v31
    %86 = vmatprep.subr.mxu0 0.0
    %87 = vmatpush1.msra.mxu0 %v32
    %88 = vmatprep.subr.mxu0 0.0
    %89 = vmatpush1.msra.mxu0 %v33
    %90 = vmatprep.subr.mxu0 0.0
    %91 = vmatpush1.msra.mxu0 %v34
    %92 = vmatprep.subr.mxu0 0.0
    %93 = vmatpush1.msra.mxu0 %v35
    %94 = vmatprep.subr.mxu0 0.0
    %95 = vmatpush1.msra.mxu0 %v36
    %96 = vmatprep.subr.mxu0 0.0
    %97 = vmatpush1.msra.mxu0 %v37
    %98 = vmatprep.subr.mxu0 0.0
    %99 = vmatpush1.msra.mxu0 %v38
    %100 = vmatprep.subr.mxu0 0.0
    %101 = vmatpush1.msra.mxu0 %v39
    %102 = vmatprep.subr.mxu0 0.0
    %103 = vmatpush1.msra.mxu0 %v40
    %104 = vmatprep.subr.mxu0 0.0
    %105 = vmatpush1.msra.mxu0 %v41
    %106 = vmatprep.subr.mxu0 0.0
    %107 = vmatpush1.msra.mxu0 %v42
    %108 = vmatprep.subr.mxu0 0.0
    %109 = vmatpush1.msra.mxu0 %v43
    %110 = vmatprep.subr.mxu0 0.0
    %111 = vmatpush1.msra.mxu0 %v44
    %112 = vmatprep.subr.mxu0 0.0
    %113 = vmatpush1.msra.mxu0 %v45
    %114 = vmatprep.subr.mxu0 0.0
    %115 = vmatpush1.msra.mxu0 %v46
    %116 = vmatprep.subr.mxu0 0.0
    %117 = vmatpush1.msra.mxu0 %v47
    %118 = vmatprep.subr.mxu0 0.0
    %119 = vmatpush1.msra.mxu0 %v48
    %120 = vmatprep.mubr.f32.mxu0 %v16
    %121 = vmatmul.mubr.f32.gmra.mrb[0].mxu0 %v15
    %v122 = vpop.f32.mrb[0].mxu0
    %v123 = vadd.f32 %v54, %v122
    %v124 = vpop.f32.mrb[0].mxu0
    %125 = vdwg.mxu0
    %126 = vst [vmem:[#allocation2] sm:$0xff] %v123
    // Predicated region
    $region14: #{linear_cim_pallas.5} parent=1 // pred_check
      _
    $region15: #{linear_cim_pallas.5} parent=1 // pred_check_branch
      %128 = sbr.rel (0) target = $region17
    $region16: #{linear_cim_pallas.5} parent=1 // pred_region
      %s130 = ssub.s32 128, 128
      %131 = vsyncadd [#allocation3], %s130
      %s133 = sshll.u32 [#allocation2], 4
      %s134 = int_to_ptr.vmem [resolvable:$true] %s133
      %136 = dma.vmem_to_hbm [thread:$0]  %s134, 128, %s3, [#allocation3]
    $region17: #{linear_cim_pallas.5} parent=1 // pred_fallthru
      _
    // Predicated region
    $region18: #{linear_cim_pallas.5} parent=1 // pred_check
      _
    $region19: #{linear_cim_pallas.5} parent=1 // pred_check_branch
      %138 = sbr.rel (0) target = $region21
    $region20: #{linear_cim_pallas.5} parent=1 // pred_region
      %139 = dma.done [#allocation3], 128
    $region21: #{linear_cim_pallas.5} parent=1 // pred_fallthru
      _
    %140 = vsyncpa [#allocation3], 1

// kernel: linear_cim_pallas.4
$region0: #{linear_cim_pallas.4}
  #allocation0 [shape = 'u32[]', space=smem, size = 0x4, offset = 0x4, fixed_abs, tag = 'smem constant byte address 0x4 - core index']
  #allocation1 [shape = 'u32[144,128]{1,0:T(1,128)}', space=vmem, size = 0x12000, scoped, tag = 'internal scratch']
  %s0 = inlined_call_operand.hbm [shape: f32[128,512], index: 0, kind: input, shape index: {}]
  %s1 = inlined_call_operand.vmem [shape: f32[128,256], index: 1, kind: output, shape index: {}]
  %s2 = sld [smem:[#allocation0]]
  $region22: #{linear_cim_pallas.4} parent=0
    _
  %s4 = ssub.s32 1, %s2
  %s5 = scalar_select 0, %s4, %s2
  $region1: #{linear_cim_pallas.4} parent=0
    #allocation2 [shape = 'u8[262144]{0}', space=vmem, size = 0x40000, scoped, tag = 'input window, operand 0, single buffered']
    #allocation3 [shape = 's32[1]{0}', space=sflag, size = 0x4, scoped, tag = 'scoped memory for linear_cim_pallas.4']
    %6 = vsyncpa [#allocation3], 0
    // Predicated region
    $region2: #{linear_cim_pallas.4} parent=1 // pred_check
      _
    $region3: #{linear_cim_pallas.4} parent=1 // pred_check_branch
      %8 = sbr.rel (0) target = $region5
    $region4: #{linear_cim_pallas.4} parent=1 // pred_region
      %s10 = ssub.s32 8192, 8192
      %11 = vsyncadd [#allocation3], %s10
      %s12 = sshll.u32 [#allocation2], 4
      %s13 = int_to_ptr.vmem [resolvable:$true] %s12
      %18 = dma.hbm_to_vmem [thread:$0]  %s0, 8192, %s13, [#allocation3], 512, 512, 32
    $region5: #{linear_cim_pallas.4} parent=1 // pred_fallthru
      _
    // Predicated region
    $region6: #{linear_cim_pallas.4} parent=1 // pred_check
      _
    $region7: #{linear_cim_pallas.4} parent=1 // pred_check_branch
      %20 = sbr.rel (0) target = $region9
    $region8: #{linear_cim_pallas.4} parent=1 // pred_region
      %21 = dma.done [#allocation3], 8192
    $region9: #{linear_cim_pallas.4} parent=1 // pred_fallthru
      _
    %p22 = scmp.eq.s32.totalorder 0, 0
    // Predicated region
    $region10: #{linear_cim_pallas.4} parent=1 // pred_check
      %p23 = pneg %p22
    $region11: #{linear_cim_pallas.4} parent=1 // pred_check_branch
      %25 = sbr.rel (%p23) target = $region13
    $region12: #{linear_cim_pallas.4} parent=1 // pred_region
      %26 = vst [vmem:[%s1] sm:$0xff] 0.0
      %27 = vst [vmem:[%s1 + $0x8] sm:$0xff] 0.0
      %28 = vst [vmem:[%s1 + $0x10] sm:$0xff] 0.0
      %29 = vst [vmem:[%s1 + $0x18] sm:$0xff] 0.0
      %30 = vst [vmem:[%s1 + $0x20] sm:$0xff] 0.0
      %31 = vst [vmem:[%s1 + $0x28] sm:$0xff] 0.0
      %32 = vst [vmem:[%s1 + $0x30] sm:$0xff] 0.0
      %33 = vst [vmem:[%s1 + $0x38] sm:$0xff] 0.0
      %34 = vst [vmem:[%s1 + $0x40] sm:$0xff] 0.0
      %35 = vst [vmem:[%s1 + $0x48] sm:$0xff] 0.0
      %36 = vst [vmem:[%s1 + $0x50] sm:$0xff] 0.0
      %37 = vst [vmem:[%s1 + $0x58] sm:$0xff] 0.0
      %38 = vst [vmem:[%s1 + $0x60] sm:$0xff] 0.0
      %39 = vst [vmem:[%s1 + $0x68] sm:$0xff] 0.0
      %40 = vst [vmem:[%s1 + $0x70] sm:$0xff] 0.0
      %41 = vst [vmem:[%s1 + $0x78] sm:$0xff] 0.0
      %42 = vst [vmem:[%s1 + $0x80] sm:$0xff] 0.0
      %43 = vst [vmem:[%s1 + $0x88] sm:$0xff] 0.0
      %44 = vst [vmem:[%s1 + $0x90] sm:$0xff] 0.0
      %45 = vst [vmem:[%s1 + $0x98] sm:$0xff] 0.0
      %46 = vst [vmem:[%s1 + $0xa0] sm:$0xff] 0.0
      %47 = vst [vmem:[%s1 + $0xa8] sm:$0xff] 0.0
      %48 = vst [vmem:[%s1 + $0xb0] sm:$0xff] 0.0
      %49 = vst [vmem:[%s1 + $0xb8] sm:$0xff] 0.0
      %50 = vst [vmem:[%s1 + $0xc0] sm:$0xff] 0.0
      %51 = vst [vmem:[%s1 + $0xc8] sm:$0xff] 0.0
      %52 = vst [vmem:[%s1 + $0xd0] sm:$0xff] 0.0
      %53 = vst [vmem:[%s1 + $0xd8] sm:$0xff] 0.0
      %54 = vst [vmem:[%s1 + $0xe0] sm:$0xff] 0.0
      %55 = vst [vmem:[%s1 + $0xe8] sm:$0xff] 0.0
      %56 = vst [vmem:[%s1 + $0xf0] sm:$0xff] 0.0
      %57 = vst [vmem:[%s1 + $0xf8] sm:$0xff] 0.0
    $region13: #{linear_cim_pallas.4} parent=1 // pred_fallthru
      _
    %v58 = vld [vmem:[#allocation2] sm:$0xff]
    %v59 = vld [vmem:[#allocation2 + $0x8] sm:$0xff]
    %v60 = vld [vmem:[#allocation2 + $0x20] sm:$0xff]
    %v61 = vld [vmem:[#allocation2 + $0x28] sm:$0xff]
    %v62 = vld [vmem:[#allocation2 + $0x40] sm:$0xff]
    %v63 = vld [vmem:[#allocation2 + $0x48] sm:$0xff]
    %v64 = vld [vmem:[#allocation2 + $0x60] sm:$0xff]
    %v65 = vld [vmem:[#allocation2 + $0x68] sm:$0xff]
    %v66 = vld [vmem:[#allocation2 + $0x80] sm:$0xff]
    %v67 = vld [vmem:[#allocation2 + $0x88] sm:$0xff]
    %v68 = vld [vmem:[#allocation2 + $0xa0] sm:$0xff]
    %v69 = vld [vmem:[#allocation2 + $0xa8] sm:$0xff]
    %v70 = vld [vmem:[#allocation2 + $0xc0] sm:$0xff]
    %v71 = vld [vmem:[#allocation2 + $0xc8] sm:$0xff]
    %v72 = vld [vmem:[#allocation2 + $0xe0] sm:$0xff]
    %v73 = vld [vmem:[#allocation2 + $0xe8] sm:$0xff]
    %v74 = vld [vmem:[#allocation2 + $0x100] sm:$0xff]
    %v75 = vld [vmem:[#allocation2 + $0x108] sm:$0xff]
    %v76 = vld [vmem:[#allocation2 + $0x120] sm:$0xff]
    %v77 = vld [vmem:[#allocation2 + $0x128] sm:$0xff]
    %v78 = vld [vmem:[#allocation2 + $0x140] sm:$0xff]
    %v79 = vld [vmem:[#allocation2 + $0x148] sm:$0xff]
    %v80 = vld [vmem:[#allocation2 + $0x160] sm:$0xff]
    %v81 = vld [vmem:[#allocation2 + $0x168] sm:$0xff]
    %v82 = vld [vmem:[#allocation2 + $0x180] sm:$0xff]
    %v83 = vld [vmem:[#allocation2 + $0x188] sm:$0xff]
    %v84 = vld [vmem:[#allocation2 + $0x1a0] sm:$0xff]
    %v85 = vld [vmem:[#allocation2 + $0x1a8] sm:$0xff]
    %v86 = vld [vmem:[#allocation2 + $0x1c0] sm:$0xff]
    %v87 = vld [vmem:[#allocation2 + $0x1c8] sm:$0xff]
    %v88 = vld [vmem:[#allocation2 + $0x1e0] sm:$0xff]
    %v89 = vld [vmem:[#allocation2 + $0x1e8] sm:$0xff]
    %v90 = vld [vmem:[#allocation2 + $0x10] sm:$0xff]
    %v91 = vld [vmem:[#allocation2 + $0x18] sm:$0xff]
    %v92 = vld [vmem:[#allocation2 + $0x30] sm:$0xff]
    %v93 = vld [vmem:[#allocation2 + $0x38] sm:$0xff]
    %v94 = vld [vmem:[#allocation2 + $0x50] sm:$0xff]
    %v95 = vld [vmem:[#allocation2 + $0x58] sm:$0xff]
    %v96 = vld [vmem:[#allocation2 + $0x70] sm:$0xff]
    %v97 = vld [vmem:[#allocation2 + $0x78] sm:$0xff]
    %v98 = vld [vmem:[#allocation2 + $0x90] sm:$0xff]
    %v99 = vld [vmem:[#allocation2 + $0x98] sm:$0xff]
    %v100 = vld [vmem:[#allocation2 + $0xb0] sm:$0xff]
    %v101 = vld [vmem:[#allocation2 + $0xb8] sm:$0xff]
    %v102 = vld [vmem:[#allocation2 + $0xd0] sm:$0xff]
    %v103 = vld [vmem:[#allocation2 + $0xd8] sm:$0xff]
    %v104 = vld [vmem:[#allocation2 + $0xf0] sm:$0xff]
    %v105 = vld [vmem:[#allocation2 + $0xf8] sm:$0xff]
    %v106 = vld [vmem:[#allocation2 + $0x110] sm:$0xff]
    %v107 = vld [vmem:[#allocation2 + $0x118] sm:$0xff]
    %v108 = vld [vmem:[#allocation2 + $0x130] sm:$0xff]
    %v109 = vld [vmem:[#allocation2 + $0x138] sm:$0xff]
    %v110 = vld [vmem:[#allocation2 + $0x150] sm:$0xff]
    %v111 = vld [vmem:[#allocation2 + $0x158] sm:$0xff]
    %v112 = vld [vmem:[#allocation2 + $0x170] sm:$0xff]
    %v113 = vld [vmem:[#allocation2 + $0x178] sm:$0xff]
    %v114 = vld [vmem:[#allocation2 + $0x190] sm:$0xff]
    %v115 = vld [vmem:[#allocation2 + $0x198] sm:$0xff]
    %v116 = vld [vmem:[#allocation2 + $0x1b0] sm:$0xff]
    %v117 = vld [vmem:[#allocation2 + $0x1b8] sm:$0xff]
    %v118 = vld [vmem:[#allocation2 + $0x1d0] sm:$0xff]
    %v119 = vld [vmem:[#allocation2 + $0x1d8] sm:$0xff]
    %v120 = vld [vmem:[#allocation2 + $0x1f0] sm:$0xff]
    %v121 = vld [vmem:[#allocation2 + $0x1f8] sm:$0xff]
    %v122 = vadd.f32 %v58, %v90
    %v123 = vadd.f32 %v59, %v91
    %v124 = vadd.f32 %v60, %v92
    %v125 = vadd.f32 %v61, %v93
    %v126 = vadd.f32 %v62, %v94
    %v127 = vadd.f32 %v63, %v95
    %v128 = vadd.f32 %v64, %v96
    %v129 = vadd.f32 %v65, %v97
    %v130 = vadd.f32 %v66, %v98
    %v131 = vadd.f32 %v67, %v99
    %v132 = vadd.f32 %v68, %v100
    %v133 = vadd.f32 %v69, %v101
    %v134 = vadd.f32 %v70, %v102
    %v135 = vadd.f32 %v71, %v103
    %v136 = vadd.f32 %v72, %v104
    %v137 = vadd.f32 %v73, %v105
    %v138 = vadd.f32 %v74, %v106
    %v139 = vadd.f32 %v75, %v107
    %v140 = vadd.f32 %v76, %v108
    %v141 = vadd.f32 %v77, %v109
    %v142 = vadd.f32 %v78, %v110
    %v143 = vadd.f32 %v79, %v111
    %v144 = vadd.f32 %v80, %v112
    %v145 = vadd.f32 %v81, %v113
    %v146 = vadd.f32 %v82, %v114
    %v147 = vadd.f32 %v83, %v115
    %v148 = vadd.f32 %v84, %v116
    %v149 = vadd.f32 %v85, %v117
    %v150 = vadd.f32 %v86, %v118
    %v151 = vadd.f32 %v87, %v119
    %v152 = vadd.f32 %v88, %v120
    %v153 = vadd.f32 %v89, %v121
    %v154 = vld [vmem:[%s1] sm:$0xff]
    %v155 = vld [vmem:[%s1 + $0x8] sm:$0xff]
    %v156 = vld [vmem:[%s1 + $0x10] sm:$0xff]
    %v157 = vld [vmem:[%s1 + $0x18] sm:$0xff]
    %v158 = vld [vmem:[%s1 + $0x20] sm:$0xff]
    %v159 = vld [vmem:[%s1 + $0x28] sm:$0xff]
    %v160 = vld [vmem:[%s1 + $0x30] sm:$0xff]
    %v161 = vld [vmem:[%s1 + $0x38] sm:$0xff]
    %v162 = vld [vmem:[%s1 + $0x40] sm:$0xff]
    %v163 = vld [vmem:[%s1 + $0x48] sm:$0xff]
    %v164 = vld [vmem:[%s1 + $0x50] sm:$0xff]
    %v165 = vld [vmem:[%s1 + $0x58] sm:$0xff]
    %v166 = vld [vmem:[%s1 + $0x60] sm:$0xff]
    %v167 = vld [vmem:[%s1 + $0x68] sm:$0xff]
    %v168 = vld [vmem:[%s1 + $0x70] sm:$0xff]
    %v169 = vld [vmem:[%s1 + $0x78] sm:$0xff]
    %v170 = vld [vmem:[%s1 + $0x80] sm:$0xff]
    %v171 = vld [vmem:[%s1 + $0x88] sm:$0xff]
    %v172 = vld [vmem:[%s1 + $0x90] sm:$0xff]
    %v173 = vld [vmem:[%s1 + $0x98] sm:$0xff]
    %v174 = vld [vmem:[%s1 + $0xa0] sm:$0xff]
    %v175 = vld [vmem:[%s1 + $0xa8] sm:$0xff]
    %v176 = vld [vmem:[%s1 + $0xb0] sm:$0xff]
    %v177 = vld [vmem:[%s1 + $0xb8] sm:$0xff]
    %v178 = vld [vmem:[%s1 + $0xc0] sm:$0xff]
    %v179 = vld [vmem:[%s1 + $0xc8] sm:$0xff]
    %v180 = vld [vmem:[%s1 + $0xd0] sm:$0xff]
    %v181 = vld [vmem:[%s1 + $0xd8] sm:$0xff]
    %v182 = vld [vmem:[%s1 + $0xe0] sm:$0xff]
    %v183 = vld [vmem:[%s1 + $0xe8] sm:$0xff]
    %v184 = vld [vmem:[%s1 + $0xf0] sm:$0xff]
    %v185 = vld [vmem:[%s1 + $0xf8] sm:$0xff]
    %v186 = vadd.f32 %v154, %v122
    %v187 = vadd.f32 %v155, %v123
    %v188 = vadd.f32 %v156, %v124
    %v189 = vadd.f32 %v157, %v125
    %v190 = vadd.f32 %v158, %v126
    %v191 = vadd.f32 %v159, %v127
    %v192 = vadd.f32 %v160, %v128
    %v193 = vadd.f32 %v161, %v129
    %v194 = vadd.f32 %v162, %v130
    %v195 = vadd.f32 %v163, %v131
    %v196 = vadd.f32 %v164, %v132
    %v197 = vadd.f32 %v165, %v133
    %v198 = vadd.f32 %v166, %v134
    %v199 = vadd.f32 %v167, %v135
    %v200 = vadd.f32 %v168, %v136
    %v201 = vadd.f32 %v169, %v137
    %v202 = vadd.f32 %v170, %v138
    %v203 = vadd.f32 %v171, %v139
    %v204 = vadd.f32 %v172, %v140
    %v205 = vadd.f32 %v173, %v141
    %v206 = vadd.f32 %v174, %v142
    %v207 = vadd.f32 %v175, %v143
    %v208 = vadd.f32 %v176, %v144
    %v209 = vadd.f32 %v177, %v145
    %v210 = vadd.f32 %v178, %v146
    %v211 = vadd.f32 %v179, %v147
    %v212 = vadd.f32 %v180, %v148
    %v213 = vadd.f32 %v181, %v149
    %v214 = vadd.f32 %v182, %v150
    %v215 = vadd.f32 %v183, %v151
    %v216 = vadd.f32 %v184, %v152
    %v217 = vadd.f32 %v185, %v153
    %218 = vst [vmem:[%s1] sm:$0xff] %v186
    %219 = vst [vmem:[%s1 + $0x8] sm:$0xff] %v187
    %220 = vst [vmem:[%s1 + $0x10] sm:$0xff] %v188
    %221 = vst [vmem:[%s1 + $0x18] sm:$0xff] %v189
    %222 = vst [vmem:[%s1 + $0x20] sm:$0xff] %v190
    %223 = vst [vmem:[%s1 + $0x28] sm:$0xff] %v191
    %224 = vst [vmem:[%s1 + $0x30] sm:$0xff] %v192
    %225 = vst [vmem:[%s1 + $0x38] sm:$0xff] %v193
    %226 = vst [vmem:[%s1 + $0x40] sm:$0xff] %v194
    %227 = vst [vmem:[%s1 + $0x48] sm:$0xff] %v195
    %228 = vst [vmem:[%s1 + $0x50] sm:$0xff] %v196
    %229 = vst [vmem:[%s1 + $0x58] sm:$0xff] %v197
    %230 = vst [vmem:[%s1 + $0x60] sm:$0xff] %v198
    %231 = vst [vmem:[%s1 + $0x68] sm:$0xff] %v199
    %232 = vst [vmem:[%s1 + $0x70] sm:$0xff] %v200
    %233 = vst [vmem:[%s1 + $0x78] sm:$0xff] %v201
    %234 = vst [vmem:[%s1 + $0x80] sm:$0xff] %v202
    %235 = vst [vmem:[%s1 + $0x88] sm:$0xff] %v203
    %236 = vst [vmem:[%s1 + $0x90] sm:$0xff] %v204
    %237 = vst [vmem:[%s1 + $0x98] sm:$0xff] %v205
    %238 = vst [vmem:[%s1 + $0xa0] sm:$0xff] %v206
    %239 = vst [vmem:[%s1 + $0xa8] sm:$0xff] %v207
    %240 = vst [vmem:[%s1 + $0xb0] sm:$0xff] %v208
    %241 = vst [vmem:[%s1 + $0xb8] sm:$0xff] %v209
    %242 = vst [vmem:[%s1 + $0xc0] sm:$0xff] %v210
    %243 = vst [vmem:[%s1 + $0xc8] sm:$0xff] %v211
    %244 = vst [vmem:[%s1 + $0xd0] sm:$0xff] %v212
    %245 = vst [vmem:[%s1 + $0xd8] sm:$0xff] %v213
    %246 = vst [vmem:[%s1 + $0xe0] sm:$0xff] %v214
    %247 = vst [vmem:[%s1 + $0xe8] sm:$0xff] %v215
    %248 = vst [vmem:[%s1 + $0xf0] sm:$0xff] %v216
    %249 = vst [vmem:[%s1 + $0xf8] sm:$0xff] %v217
    // Predicated region
    $region14: #{linear_cim_pallas.4} parent=1 // pred_check
      _
    $region15: #{linear_cim_pallas.4} parent=1 // pred_check_branch
      %251 = sbr.rel (0) target = $region17
    $region16: #{linear_cim_pallas.4} parent=1 // pred_region
      _
    $region17: #{linear_cim_pallas.4} parent=1 // pred_fallthru
      _
    // Predicated region
    $region18: #{linear_cim_pallas.4} parent=1 // pred_check
      _
    $region19: #{linear_cim_pallas.4} parent=1 // pred_check_branch
      %253 = sbr.rel (0) target = $region21
    $region20: #{linear_cim_pallas.4} parent=1 // pred_region
      _
    $region21: #{linear_cim_pallas.4} parent=1 // pred_fallthru
      _
    %254 = vsyncpa [#allocation3], 1

</llo_original>
